<compile_context>
chip_gen: v5e
topology: v5e:2x2
jax: 0.10.0
libtpu: 0.0.40
codegen_flags: <defaults>
</compile_context>

<pallas_src>
import numpy as np
import jax
import jax.numpy as jnp
from jax import lax
from jax.experimental import pallas as pl
from jax.experimental.pallas import tpu as pltpu

VMEM = pltpu.MemorySpace.VMEM
SMEM = pltpu.MemorySpace.SMEM


def _sum_all(x):
    """Full reduction kept as a (1,1) array (lane reduce, then sublane reduce)
    so downstream sqrt/max/scale remain vector ops."""
    return jnp.sum(jnp.sum(x, axis=1, keepdims=True), axis=0, keepdims=True)


# ----------------------------- fused kernel -------------------------------

def _fused_forward_kernel(sig_ref, lam_ref, k1_ref, k2_ref, a_ref, b_ref, ip_ref,
                          mmd_ref, pen_ref, dist_ref):
    """Whole manifold_alignment forward in one kernel.

    sig_ref : (S,)  SMEM   RBF bandwidths sigma_s (already squared, torch conv.)
    lam_ref : (2,)  SMEM   [lambda1, lambda2]
    k1_ref  : (n1,n1) VMEM   k2_ref : (n2,n2) VMEM
    a_ref   : (n1,f)  VMEM   b_ref  : (n2,f)  VMEM
    ip_ref  : (f,f)   VMEM
    outputs : three (1,1) VMEM scalars -> mmd, penalty, distortion
    """
    f32 = jnp.float32
    k1 = k1_ref[...].astype(f32)
    k2 = k2_ref[...].astype(f32)
    alpha = a_ref[...].astype(f32)
    beta = b_ref[...].astype(f32)
    ip = ip_ref[...].astype(f32)

    n1 = k1.shape[0]
    n2 = k2.shape[0]
    f = alpha.shape[1]
    n = n1 + n2

    # ---- block-diagonal / stacked operands (built once, in registers) ----
    kb = jnp.concatenate(
        [jnp.concatenate([k1, jnp.zeros((n1, n2), f32)], axis=1),
         jnp.concatenate([jnp.zeros((n2, n1), f32), k2], axis=1)],
        axis=0)                                                         # (n, n)
    pab = jnp.concatenate([alpha, beta], axis=0)                        # (n, f)
    ab = jnp.concatenate(
        [jnp.concatenate([alpha, jnp.zeros((n1, f), f32)], axis=1),
         jnp.concatenate([jnp.zeros((n2, f), f32), beta], axis=1)],
        axis=0)                                                         # (n, 2f)

    # ---- MXU push 1: stacked projection KA = [k1@alpha ; k2@beta] ----
    ka = jnp.dot(kb, pab, preferred_element_type=f32)                   # (n, f)

    # ---- MXU push 2: stacked Gram (g11 / g22 / g12 as quadrants) ----
    g = lax.dot_general(ka, ka, (((1,), (1,)), ((), ())),
                        preferred_element_type=f32)                     # (n, n)

    # ---- MXU push 3: stacked penalty contraction [alpha^T ka1 ; beta^T ka2] ----
    ptka = lax.dot_general(ab, ka, (((0,), (0,)), ((), ())),
                           preferred_element_type=f32)                  # (2f, f)

    # quadrant masks (shared by MMD weights, norms and distortion reductions)
    ridx = lax.broadcasted_iota(jnp.int32, (n, n), 0)
    cidx = lax.broadcasted_iota(jnp.int32, (n, n), 1)
    q11 = (ridx < n1) & (cidx < n1)
    q22 = (ridx >= n1) & (cidx >= n1)
    eye = (ridx == cidx).astype(f32)

    # squared row norms straight from the Gram diagonal (no column transposes)
    gd = g * eye
    nsq_row = jnp.sum(gd, axis=0, keepdims=True)                        # (1, n)
    nsq_col = jnp.sum(gd, axis=1, keepdims=True)                        # (n, 1)
    # ||x_i - x_j||^2 via expansion; clamp tiny negatives from f32 cancellation.
    d = jnp.maximum(nsq_col + nsq_row - 2.0 * g, 0.0)                   # (n, n)

    # ---- MMD: one exp sweep over sigmas + ONE quadrant-weighted reduction ----
    # Reference kernel: sum_s exp(-d / (2 * sigma_s)); sigma is already squared.
    dneg = d * (-0.5)
    acc = jnp.exp(dneg / sig_ref[0])
    for s in range(1, sig_ref.shape[0]):        # static unrolled sigma loop
        acc = acc + jnp.exp(dneg / sig_ref[s])
    w = jnp.where(q11, jnp.float32(1.0 / (n1 * n1)),
                  jnp.where(q22, jnp.float32(1.0 / (n2 * n2)),
                            jnp.float32(-1.0 / (n1 * n2))))
    mmd_raw = _sum_all(w * acc)                                         # (1, 1)
    mmd_ref[...] = jnp.maximum(mmd_raw, 0.0)     # torch: `if cost < 0: cost = 0`

    # ---- penalty: Frobenius norms of alpha^T k1 alpha - ip, beta^T k2 beta - ip ----
    lam1 = lam_ref[0]
    lam2 = lam_ref[1]
    r1 = ptka[:f, :] - ip
    r2 = ptka[f:, :] - ip
    pen_ref[...] = (jnp.sqrt(_sum_all(r1 * r1)) +
                    jnp.sqrt(_sum_all(r2 * r2))) * lam1

    # ---- distortion: reuse the stacked Gram, masked quadrant reductions ----
    ed = g - kb                                  # diag quadrants: g11-k1, g22-k2
    ed2 = ed * ed
    e1 = _sum_all(jnp.where(q11, ed2, 0.0))
    e2 = _sum_all(jnp.where(q22, ed2, 0.0))
    dist_ref[...] = (jnp.sqrt(e1) + jnp.sqrt(e2)) * lam2


# -------------------- tiny matmul for the cold sigma==0 branch --------------------

def _matmul_kernel(a_ref, b_ref, o_ref):
    o_ref[...] = jnp.dot(a_ref[...], b_ref[...],
                         preferred_element_type=jnp.float32).astype(o_ref.dtype)


def pl_matmul(a, b):
    m, k = a.shape
    k2, n = b.shape
    assert k == k2, "inner dims must match"
    return pl.pallas_call(
        _matmul_kernel,
        out_shape=jax.ShapeDtypeStruct((m, n), jnp.float32),
        in_specs=[pl.BlockSpec(memory_space=VMEM),
                  pl.BlockSpec(memory_space=VMEM)],
        out_specs=pl.BlockSpec(memory_space=VMEM),
    )(a, b)


# ------------------------------ forward glue -------------------------------

@jax.jit
def _fused_forward(k1, k2, alpha, beta, ip, sigmas, lams):
    mmd, pen, dist = pl.pallas_call(
        _fused_forward_kernel,
        out_shape=(jax.ShapeDtypeStruct((1, 1), jnp.float32),) * 3,
        in_specs=[pl.BlockSpec(memory_space=SMEM),   # sigmas
                  pl.BlockSpec(memory_space=SMEM),   # [lambda1, lambda2]
                  pl.BlockSpec(memory_space=VMEM),   # k1
                  pl.BlockSpec(memory_space=VMEM),   # k2
                  pl.BlockSpec(memory_space=VMEM),   # alpha
                  pl.BlockSpec(memory_space=VMEM),   # beta
                  pl.BlockSpec(memory_space=VMEM)],  # ip
        out_specs=(pl.BlockSpec(memory_space=VMEM),) * 3,
    )(sigmas, lams, k1, k2, alpha, beta, ip)
    return mmd[0, 0], pen[0, 0], dist[0, 0]


def calc_sigma(x1, x2):
    # Host-side numpy, exactly like the reference implementation.
    const = 8.0
    mat = np.concatenate((np.asarray(x1), np.asarray(x2)), axis=0)
    dist = []
    for i in range(mat.shape[0]):
        euc = np.sqrt(np.sum(np.square(mat[i, :] - mat), axis=1))
        dist.append(sorted(euc)[1])
    sigma = float(np.square(const * np.median(dist)))
    print('Calculated sigma:', sigma)
    return sigma


def manifold_alignment_forward(params, k1, k2, ip, sigmas, lambda1, lambda2):
    alpha, beta = params["alpha"], params["beta"]

    # `if sigmas == 0:` branch of the torch forward. Decided on the host BEFORE
    # the jitted hot path so the fused kernel never syncs.
    sig_np = np.atleast_1d(np.asarray(sigmas, dtype=np.float32)).reshape(-1)
    if np.all(sig_np == 0.0):
        # TODO(synk): calc_sigma is inherently host-side numpy (sort/median),
        # matching the torch .detach().cpu().numpy() round-trip.
        ka1 = pl_matmul(k1, alpha)
        ka2 = pl_matmul(k2, beta)
        sig_np = np.asarray([calc_sigma(np.asarray(ka1), np.asarray(ka2))],
                            dtype=np.float32)
    sigmas_dev = jnp.asarray(sig_np, dtype=jnp.float32)
    lams = jnp.asarray([float(lambda1), float(lambda2)], dtype=jnp.float32)

    mmd, penalty, distortion = _fused_forward(
        k1, k2, alpha, beta, ip, sigmas_dev, lams)
    return mmd, penalty, distortion, sigmas_dev


# ---------------------------------- main -----------------------------------

if __name__ == "__main__":
    nfeat, num_k1, num_k2 = 8, 16, 16

    key = jax.random.PRNGKey(0)
    k_alpha, k_beta, k_a, k_b = jax.random.split(key, 4)

    # Deterministic parameter init, matching torch .uniform_(0.0, 0.1)
    params = {
        "alpha": jax.random.uniform(k_alpha, (num_k1, nfeat), jnp.float32, 0.0, 0.1),
        "beta":  jax.random.uniform(k_beta,  (num_k2, nfeat), jnp.float32, 0.0, 0.1),
    }

    # Synthetic symmetric PSD kernel (Gram) matrices, identity inner-product target.
    a = jax.random.normal(k_a, (num_k1, nfeat), jnp.float32)
    b = jax.random.normal(k_b, (num_k2, nfeat), jnp.float32)
    k1 = a @ a.T                             # (16, 16)
    k2 = b @ b.T                             # (16, 16)
    ip = jnp.eye(nfeat, dtype=jnp.float32)   # (8, 8)
    sigmas = [1.0]                           # host-side value, like the reference
    lambda1, lambda2 = 1.0, 1.0

    mmd, penalty, distortion, sig_out = manifold_alignment_forward(
        params, k1, k2, ip, sigmas, lambda1, lambda2)

    jax.block_until_ready((mmd, penalty, distortion, sig_out))
    print("KERNEL_OK")
</pallas_src>

<mosaic_0001>
module attributes {stable_mosaic.version = 11 : i64} {
  func.func @_fused_forward_kernel(%arg0: memref<1xf32, #tpu.memory_space<smem>>, %arg1: memref<2xf32, #tpu.memory_space<smem>>, %arg2: memref<16x16xf32, #tpu.memory_space<vmem>>, %arg3: memref<16x16xf32, #tpu.memory_space<vmem>>, %arg4: memref<16x8xf32, #tpu.memory_space<vmem>>, %arg5: memref<16x8xf32, #tpu.memory_space<vmem>>, %arg6: memref<8x8xf32, #tpu.memory_space<vmem>>, %arg7: memref<1x1xf32, #tpu.memory_space<vmem>>, %arg8: memref<1x1xf32, #tpu.memory_space<vmem>>, %arg9: memref<1x1xf32, #tpu.memory_space<vmem>>) attributes {dimension_semantics = [], scalar_prefetch = 0 : i64, scratch_operands = 0 : i64, tpu.core_type = #tpu.core_type<tc>} {
    %c0 = arith.constant 0 : index
    %c0_0 = arith.constant 0 : index
    %0 = vector.load %arg2[%c0, %c0_0] : memref<16x16xf32, #tpu.memory_space<vmem>>, vector<16x16xf32>
    %c0_1 = arith.constant 0 : index
    %c0_2 = arith.constant 0 : index
    %1 = vector.load %arg3[%c0_1, %c0_2] : memref<16x16xf32, #tpu.memory_space<vmem>>, vector<16x16xf32>
    %c0_3 = arith.constant 0 : index
    %c0_4 = arith.constant 0 : index
    %2 = vector.load %arg4[%c0_3, %c0_4] : memref<16x8xf32, #tpu.memory_space<vmem>>, vector<16x8xf32>
    %c0_5 = arith.constant 0 : index
    %c0_6 = arith.constant 0 : index
    %3 = vector.load %arg5[%c0_5, %c0_6] : memref<16x8xf32, #tpu.memory_space<vmem>>, vector<16x8xf32>
    %c0_7 = arith.constant 0 : index
    %c0_8 = arith.constant 0 : index
    %4 = vector.load %arg6[%c0_7, %c0_8] : memref<8x8xf32, #tpu.memory_space<vmem>>, vector<8x8xf32>
    %cst = arith.constant 0.000000e+00 : f32
    %5 = vector.broadcast %cst : f32 to vector<16x16xf32>
    %6 = tpu.concatenate %0, %5 in 1 : vector<16x16xf32>, vector<16x16xf32> -> vector<16x32xf32>
    %cst_9 = arith.constant 0.000000e+00 : f32
    %7 = vector.broadcast %cst_9 : f32 to vector<16x16xf32>
    %8 = tpu.concatenate %7, %1 in 1 : vector<16x16xf32>, vector<16x16xf32> -> vector<16x32xf32>
    %9 = tpu.concatenate %6, %8 in 0 : vector<16x32xf32>, vector<16x32xf32> -> vector<32x32xf32>
    %10 = tpu.concatenate %2, %3 in 0 : vector<16x8xf32>, vector<16x8xf32> -> vector<32x8xf32>
    %cst_10 = arith.constant 0.000000e+00 : f32
    %11 = vector.broadcast %cst_10 : f32 to vector<16x8xf32>
    %12 = tpu.concatenate %2, %11 in 1 : vector<16x8xf32>, vector<16x8xf32> -> vector<16x16xf32>
    %cst_11 = arith.constant 0.000000e+00 : f32
    %13 = vector.broadcast %cst_11 : f32 to vector<16x8xf32>
    %14 = tpu.concatenate %13, %3 in 1 : vector<16x8xf32>, vector<16x8xf32> -> vector<16x16xf32>
    %15 = tpu.concatenate %12, %14 in 0 : vector<16x16xf32>, vector<16x16xf32> -> vector<32x16xf32>
    %cst_12 = arith.constant dense<0.000000e+00> : vector<32x8xf32>
    %16 = tpu.matmul %9, %10, %cst_12 {dimension_numbers = #tpu.dot_dimension_numbers<[1], [0], [0], [1], [0, 0, 1, 1], [], []>} : vector<32x32xf32>, vector<32x8xf32>, vector<32x8xf32> -> vector<32x8xf32>
    %cst_13 = arith.constant dense<0.000000e+00> : vector<32x32xf32>
    %17 = tpu.matmul %16, %16, %cst_13 {dimension_numbers = #tpu.dot_dimension_numbers<[1], [1], [0], [0], [0, 0, 1, 0], [], []>} : vector<32x8xf32>, vector<32x8xf32>, vector<32x32xf32> -> vector<32x32xf32>
    %cst_14 = arith.constant dense<0.000000e+00> : vector<16x8xf32>
    %18 = tpu.matmul %15, %16, %cst_14 {dimension_numbers = #tpu.dot_dimension_numbers<[0], [0], [1], [1], [0, 1, 1, 1], [], []>} : vector<32x16xf32>, vector<32x8xf32>, vector<16x8xf32> -> vector<16x8xf32>
    %19 = tpu.iota {dimensions = array<i32: 0>} : vector<32x32xi32>
    %20 = tpu.iota {dimensions = array<i32: 1>} : vector<32x32xi32>
    %c16_i32 = arith.constant 16 : i32
    %21 = vector.broadcast %c16_i32 : i32 to vector<32x32xi32>
    %22 = arith.cmpi slt, %19, %21 : vector<32x32xi32>
    %c16_i32_15 = arith.constant 16 : i32
    %23 = vector.broadcast %c16_i32_15 : i32 to vector<32x32xi32>
    %24 = arith.cmpi slt, %20, %23 : vector<32x32xi32>
    %25 = arith.andi %22, %24 : vector<32x32xi1>
    %c16_i32_16 = arith.constant 16 : i32
    %26 = vector.broadcast %c16_i32_16 : i32 to vector<32x32xi32>
    %27 = arith.cmpi sge, %19, %26 : vector<32x32xi32>
    %c16_i32_17 = arith.constant 16 : i32
    %28 = vector.broadcast %c16_i32_17 : i32 to vector<32x32xi32>
    %29 = arith.cmpi sge, %20, %28 : vector<32x32xi32>
    %30 = arith.andi %27, %29 : vector<32x32xi1>
    %31 = arith.cmpi eq, %19, %20 : vector<32x32xi32>
    %32 = arith.extui %31 : vector<32x32xi1> to vector<32x32xi32>
    %33 = arith.sitofp %32 : vector<32x32xi32> to vector<32x32xf32>
    %34 = arith.mulf %17, %33 : vector<32x32xf32>
    %cst_18 = arith.constant dense<0.000000e+00> : vector<32xf32>
    %35 = vector.multi_reduction <add>, %34, %cst_18 [0] : vector<32x32xf32> to vector<32xf32>
    %36 = vector.shape_cast %35 : vector<32xf32> to vector<1x32xf32>
    %cst_19 = arith.constant dense<0.000000e+00> : vector<32xf32>
    %37 = vector.multi_reduction <add>, %34, %cst_19 [1] : vector<32x32xf32> to vector<32xf32>
    %38 = vector.shape_cast %37 : vector<32xf32> to vector<32x1xf32>
    %39 = vector.broadcast %38 : vector<32x1xf32> to vector<32x32xf32>
    %40 = vector.broadcast %36 : vector<1x32xf32> to vector<32x32xf32>
    %41 = arith.addf %39, %40 : vector<32x32xf32>
    %cst_20 = arith.constant 2.000000e+00 : f32
    %42 = vector.broadcast %cst_20 : f32 to vector<32x32xf32>
    %43 = arith.mulf %42, %17 : vector<32x32xf32>
    %44 = arith.subf %41, %43 : vector<32x32xf32>
    %cst_21 = arith.constant 0.000000e+00 : f32
    %45 = vector.broadcast %cst_21 : f32 to vector<32x32xf32>
    %46 = arith.maximumf %44, %45 : vector<32x32xf32>
    %cst_22 = arith.constant -5.000000e-01 : f32
    %47 = vector.broadcast %cst_22 : f32 to vector<32x32xf32>
    %48 = arith.mulf %46, %47 : vector<32x32xf32>
    %c0_23 = arith.constant 0 : index
    %49 = memref.load %arg0[%c0_23] : memref<1xf32, #tpu.memory_space<smem>>
    %50 = vector.broadcast %49 : f32 to vector<32x32xf32>
    %51 = arith.divf %48, %50 : vector<32x32xf32>
    %52 = math.exp %51 : vector<32x32xf32>
    %cst_24 = arith.constant 3.906250e-03 : f32
    %cst_25 = arith.constant -3.906250e-03 : f32
    %53 = vector.broadcast %cst_24 : f32 to vector<32x32xf32>
    %54 = vector.broadcast %cst_25 : f32 to vector<32x32xf32>
    %55 = arith.select %30, %53, %54 : vector<32x32xi1>, vector<32x32xf32>
    %cst_26 = arith.constant 3.906250e-03 : f32
    %56 = vector.broadcast %cst_26 : f32 to vector<32x32xf32>
    %57 = arith.select %25, %56, %55 : vector<32x32xi1>, vector<32x32xf32>
    %58 = arith.mulf %57, %52 : vector<32x32xf32>
    %cst_27 = arith.constant dense<0.000000e+00> : vector<32xf32>
    %59 = vector.multi_reduction <add>, %58, %cst_27 [1] : vector<32x32xf32> to vector<32xf32>
    %60 = vector.shape_cast %59 : vector<32xf32> to vector<32x1xf32>
    %cst_28 = arith.constant dense<0.000000e+00> : vector<1xf32>
    %61 = vector.multi_reduction <add>, %60, %cst_28 [0] : vector<32x1xf32> to vector<1xf32>
    %62 = vector.shape_cast %61 : vector<1xf32> to vector<1x1xf32>
    %cst_29 = arith.constant 0.000000e+00 : f32
    %63 = vector.broadcast %cst_29 : f32 to vector<1x1xf32>
    %64 = arith.maximumf %62, %63 : vector<1x1xf32>
    %c0_30 = arith.constant 0 : index
    %c0_31 = arith.constant 0 : index
    %65 = vector.load %arg7[%c0_30, %c0_31] : memref<1x1xf32, #tpu.memory_space<vmem>>, vector<1x1xf32>
    tpu.vector_store %arg7[%c0_30, %c0_31], %64 {strides = array<i32>} : memref<1x1xf32, #tpu.memory_space<vmem>>, vector<1x1xf32>,
    %c0_32 = arith.constant 0 : index
    %66 = memref.load %arg1[%c0_32] : memref<2xf32, #tpu.memory_space<smem>>
    %c1 = arith.constant 1 : index
    %67 = memref.load %arg1[%c1] : memref<2xf32, #tpu.memory_space<smem>>
    %68 = vector.extract_strided_slice %18 {offsets = [0, 0], sizes = [8, 8], strides = [1, 1]} : vector<16x8xf32> to vector<8x8xf32>
    %69 = arith.subf %68, %4 : vector<8x8xf32>
    %70 = vector.extract_strided_slice %18 {offsets = [8, 0], sizes = [8, 8], strides = [1, 1]} : vector<16x8xf32> to vector<8x8xf32>
    %71 = arith.subf %70, %4 : vector<8x8xf32>
    %72 = arith.mulf %69, %69 : vector<8x8xf32>
    %cst_33 = arith.constant dense<0.000000e+00> : vector<8xf32>
    %73 = vector.multi_reduction <add>, %72, %cst_33 [1] : vector<8x8xf32> to vector<8xf32>
    %74 = vector.shape_cast %73 : vector<8xf32> to vector<8x1xf32>
    %cst_34 = arith.constant dense<0.000000e+00> : vector<1xf32>
    %75 = vector.multi_reduction <add>, %74, %cst_34 [0] : vector<8x1xf32> to vector<1xf32>
    %76 = vector.shape_cast %75 : vector<1xf32> to vector<1x1xf32>
    %77 = math.sqrt %76 : vector<1x1xf32>
    %78 = arith.mulf %71, %71 : vector<8x8xf32>
    %cst_35 = arith.constant dense<0.000000e+00> : vector<8xf32>
    %79 = vector.multi_reduction <add>, %78, %cst_35 [1] : vector<8x8xf32> to vector<8xf32>
    %80 = vector.shape_cast %79 : vector<8xf32> to vector<8x1xf32>
    %cst_36 = arith.constant dense<0.000000e+00> : vector<1xf32>
    %81 = vector.multi_reduction <add>, %80, %cst_36 [0] : vector<8x1xf32> to vector<1xf32>
    %82 = vector.shape_cast %81 : vector<1xf32> to vector<1x1xf32>
    %83 = math.sqrt %82 : vector<1x1xf32>
    %84 = arith.addf %77, %83 : vector<1x1xf32>
    %85 = vector.broadcast %66 : f32 to vector<1x1xf32>
    %86 = arith.mulf %84, %85 : vector<1x1xf32>
    %c0_37 = arith.constant 0 : index
    %c0_38 = arith.constant 0 : index
    %87 = vector.load %arg8[%c0_37, %c0_38] : memref<1x1xf32, #tpu.memory_space<vmem>>, vector<1x1xf32>
    tpu.vector_store %arg8[%c0_37, %c0_38], %86 {strides = array<i32>} : memref<1x1xf32, #tpu.memory_space<vmem>>, vector<1x1xf32>,
    %88 = arith.subf %17, %9 : vector<32x32xf32>
    %89 = arith.mulf %88, %88 : vector<32x32xf32>
    %cst_39 = arith.constant 0.000000e+00 : f32
    %90 = vector.broadcast %cst_39 : f32 to vector<32x32xf32>
    %91 = arith.select %25, %89, %90 : vector<32x32xi1>, vector<32x32xf32>
    %cst_40 = arith.constant dense<0.000000e+00> : vector<32xf32>
    %92 = vector.multi_reduction <add>, %91, %cst_40 [1] : vector<32x32xf32> to vector<32xf32>
    %93 = vector.shape_cast %92 : vector<32xf32> to vector<32x1xf32>
    %cst_41 = arith.constant dense<0.000000e+00> : vector<1xf32>
    %94 = vector.multi_reduction <add>, %93, %cst_41 [0] : vector<32x1xf32> to vector<1xf32>
    %95 = vector.shape_cast %94 : vector<1xf32> to vector<1x1xf32>
    %cst_42 = arith.constant 0.000000e+00 : f32
    %96 = vector.broadcast %cst_42 : f32 to vector<32x32xf32>
    %97 = arith.select %30, %89, %96 : vector<32x32xi1>, vector<32x32xf32>
    %cst_43 = arith.constant dense<0.000000e+00> : vector<32xf32>
    %98 = vector.multi_reduction <add>, %97, %cst_43 [1] : vector<32x32xf32> to vector<32xf32>
    %99 = vector.shape_cast %98 : vector<32xf32> to vector<32x1xf32>
    %cst_44 = arith.constant dense<0.000000e+00> : vector<1xf32>
    %100 = vector.multi_reduction <add>, %99, %cst_44 [0] : vector<32x1xf32> to vector<1xf32>
    %101 = vector.shape_cast %100 : vector<1xf32> to vector<1x1xf32>
    %102 = math.sqrt %95 : vector<1x1xf32>
    %103 = math.sqrt %101 : vector<1x1xf32>
    %104 = arith.addf %102, %103 : vector<1x1xf32>
    %105 = vector.broadcast %67 : f32 to vector<1x1xf32>
    %106 = arith.mulf %104, %105 : vector<1x1xf32>
    %c0_45 = arith.constant 0 : index
    %c0_46 = arith.constant 0 : index
    %107 = vector.load %arg9[%c0_45, %c0_46] : memref<1x1xf32, #tpu.memory_space<vmem>>, vector<1x1xf32>
    tpu.vector_store %arg9[%c0_45, %c0_46], %106 {strides = array<i32>} : memref<1x1xf32, #tpu.memory_space<vmem>>, vector<1x1xf32>,
    return
  }
}

</mosaic_0001>

<llo_original>
// kernel: _fused_forward.1
$region0: #{_fused_forward.1}
  #allocation0 [shape = 'u32[]', space=smem, size = 0x4, offset = 0x4, fixed_abs, tag = 'smem constant byte address 0x4 - core index']
  #allocation1 [shape = 'u32[72,128]{1,0:T(1,128)}', space=vmem, size = 0x9000, scoped, tag = 'internal scratch']
  #allocation2 [shape = 'f32[1]{0:T(128)S(6)}', space=smem, size = 0x200, scoped, tag = 'scoped memory for _fused_forward.1']
  %s0 = inlined_call_operand.<no memory space> [shape: f32[1], index: 0, kind: input, shape index: {}]
  %s1 = inlined_call_operand.vmem [shape: f32[2], index: 1, kind: input, shape index: {}]
  %s2 = inlined_call_operand.vmem [shape: f32[16,16], index: 2, kind: input, shape index: {}]
  %s3 = inlined_call_operand.vmem [shape: f32[16,16], index: 3, kind: input, shape index: {}]
  %s4 = inlined_call_operand.vmem [shape: f32[16,8], index: 4, kind: input, shape index: {}]
  %s5 = inlined_call_operand.vmem [shape: f32[16,8], index: 5, kind: input, shape index: {}]
  %s6 = inlined_call_operand.vmem [shape: f32[8,8], index: 6, kind: input, shape index: {}]
  %s7 = inlined_call_operand.hbm [shape: f32[1,1], index: 7, kind: output, shape index: {0}]
  %s8 = inlined_call_operand.hbm [shape: f32[1,1], index: 8, kind: output, shape index: {1}]
  %s9 = inlined_call_operand.hbm [shape: f32[1,1], index: 9, kind: output, shape index: {2}]
  %10 = xla_tuple %s7, %s8, %s9
  %s11 = sld [smem:[#allocation0]]
  $region58: #{_fused_forward.1} parent=0
    _
  %s13 = ssub.s32 1, %s11
  %s14 = scalar_select 0, %s13, %s11
  %15 = sst [smem:[#allocation2]] %s0
  $region1: #{_fused_forward.1} parent=0
    #allocation3 [shape = 'u8[512]{0}', space=smem, size = 0x200, scoped, tag = 'input window, operand 1, single buffered']
    #allocation4 [shape = 's32[1]{0}', space=sflag, size = 0x4, scoped, tag = 'scoped memory for _fused_forward.1']
    #allocation5 [shape = 's32[1]{0}', space=sflag, size = 0x4, scoped, tag = 'scoped memory for _fused_forward.1']
    #allocation6 [shape = 'u8[512]{0}', space=vmem, size = 0x400, scoped, tag = 'output window, operand 0, single buffered']
    #allocation7 [shape = 'u8[512]{0}', space=vmem, size = 0x400, scoped, tag = 'output window, operand 1, single buffered']
    #allocation8 [shape = 's32[1]{0}', space=sflag, size = 0x4, scoped, tag = 'scoped memory for _fused_forward.1']
    #allocation9 [shape = 'u8[512]{0}', space=vmem, size = 0x400, scoped, tag = 'output window, operand 2, single buffered']
    %16 = vsyncpa [#allocation5], 0
    %17 = vsyncpa [#allocation4], 0
    %18 = vsyncpa [#allocation8], 0
    // Predicated region
    $region2: #{_fused_forward.1} parent=1 // pred_check
      _
    $region3: #{_fused_forward.1} parent=1 // pred_check_branch
      %20 = sbr.rel (0) target = $region5
    $region4: #{_fused_forward.1} parent=1 // pred_region
      _
    $region5: #{_fused_forward.1} parent=1 // pred_fallthru
      _
    // Predicated region
    $region6: #{_fused_forward.1} parent=1 // pred_check
      _
    $region7: #{_fused_forward.1} parent=1 // pred_check_branch
      %22 = sbr.rel (0) target = $region9
    $region8: #{_fused_forward.1} parent=1 // pred_region
      %24 = vsyncadd [#allocation5], 0
      %s26 = sshll.u32 %s1, 4
      %s27 = int_to_ptr.vmem [resolvable:$true] %s26
      %29 = dma.vmem_to_smem %s27, 16, [#allocation3], [#allocation5]
    $region9: #{_fused_forward.1} parent=1 // pred_fallthru
      _
    // Predicated region
    $region10: #{_fused_forward.1} parent=1 // pred_check
      _
    $region11: #{_fused_forward.1} parent=1 // pred_check_branch
      %31 = sbr.rel (0) target = $region13
    $region12: #{_fused_forward.1} parent=1 // pred_region
      _
    $region13: #{_fused_forward.1} parent=1 // pred_fallthru
      _
    // Predicated region
    $region14: #{_fused_forward.1} parent=1 // pred_check
      _
    $region15: #{_fused_forward.1} parent=1 // pred_check_branch
      %33 = sbr.rel (0) target = $region17
    $region16: #{_fused_forward.1} parent=1 // pred_region
      _
    $region17: #{_fused_forward.1} parent=1 // pred_fallthru
      _
    // Predicated region
    $region18: #{_fused_forward.1} parent=1 // pred_check
      _
    $region19: #{_fused_forward.1} parent=1 // pred_check_branch
      %35 = sbr.rel (0) target = $region21
    $region20: #{_fused_forward.1} parent=1 // pred_region
      _
    $region21: #{_fused_forward.1} parent=1 // pred_fallthru
      _
    // Predicated region
    $region22: #{_fused_forward.1} parent=1 // pred_check
      _
    $region23: #{_fused_forward.1} parent=1 // pred_check_branch
      %37 = sbr.rel (0) target = $region25
    $region24: #{_fused_forward.1} parent=1 // pred_region
      _
    $region25: #{_fused_forward.1} parent=1 // pred_fallthru
      _
    // Predicated region
    $region26: #{_fused_forward.1} parent=1 // pred_check
      _
    $region27: #{_fused_forward.1} parent=1 // pred_check_branch
      %39 = sbr.rel (0) target = $region29
    $region28: #{_fused_forward.1} parent=1 // pred_region
      _
    $region29: #{_fused_forward.1} parent=1 // pred_fallthru
      _
    // Predicated region
    $region30: #{_fused_forward.1} parent=1 // pred_check
      _
    $region31: #{_fused_forward.1} parent=1 // pred_check_branch
      %41 = sbr.rel (0) target = $region33
    $region32: #{_fused_forward.1} parent=1 // pred_region
      %43 = dma.done [#allocation5], 16
    $region33: #{_fused_forward.1} parent=1 // pred_fallthru
      _
    %44 = sfence
    %v45 = vld [vmem:[%s2] sm:$0xff]
    %v46 = vld [vmem:[%s2 + $0x8] sm:$0xff]
    %v47 = vld [vmem:[%s3] sm:$0xff]
    %v48 = vld [vmem:[%s3 + $0x8] sm:$0xff]
    %v49 = vld [vmem:[%s4] sm:$0xff]
    %v50 = vld [vmem:[%s4 + $0x8] sm:$0xff]
    %v51 = vld [vmem:[%s5] sm:$0xff]
    %v52 = vld [vmem:[%s5 + $0x8] sm:$0xff]
    %v53 = vld [vmem:[%s6] sm:$0xff]
    %vm54 = vcmask 130048
    %v55 = vsel %vm54, %v45, 0.0
    %v56 = vsel %vm54, %v46, 0.0
    %59 = vrot.lane.b32.xlu0 %v47, 16
    %v60 = vpop.permute.xlu0 %59
    %61 = vrot.lane.b32.xlu0 %v48, 16
    %v62 = vpop.permute.xlu0 %61
    %v65 = vsel %vm54, 0.0, %v60
    %v66 = vsel %vm54, 0.0, %v62
    %vm67 = vcmask 64512
    %v68 = vsel %vm67, %v49, 0.0
    %v69 = vsel %vm67, %v50, 0.0
    %72 = vrot.lane.b32.xlu0 %v51, 8
    %v73 = vpop.permute.xlu0 %72
    %74 = vrot.lane.b32.xlu0 %v52, 8
    %v75 = vpop.permute.xlu0 %74
    %v78 = vsel %vm67, 0.0, %v73
    %v79 = vsel %vm67, 0.0, %v75
    %vm80 = vcmask 261120
    %v82 = vsel %vm80, %v55, 0
    %v85 = vsel %vm80, %v56, 0
    %v88 = vsel %vm80, %v65, 0
    %v91 = vsel %vm80, %v66, 0
    %93 = vmatpush.msra.mxu0 0.0
    %94 = vmatpush.msra.mxu0 0.0
    %95 = vmatpush.msra.mxu0 0.0
    %96 = vmatpush.msra.mxu0 0.0
    %97 = vmatpush.msra.mxu0 0.0
    %98 = vmatpush.msra.mxu0 0.0
    %99 = vmatpush.msra.mxu0 0.0
    %100 = vmatpush.msra.mxu0 0.0
    %101 = vmatpush.msra.mxu0 0.0
    %102 = vmatpush.msra.mxu0 0.0
    %103 = vmatpush.msra.mxu0 0.0
    %104 = vmatpush.msra.mxu0 0.0
    %105 = vmatpush.msra.mxu0 %v52
    %106 = vmatpush.msra.mxu0 %v51
    %107 = vmatpush.msra.mxu0 %v50
    %108 = vmatpush.msra.mxu0 %v49
    %109 = vmatmul.f32.gmra.mxu0 %v82
    %v110 = vpop.f32.mrf.mxu0
    %v111 = vadd.f32 0.0, %v110
    %112 = vmatmul.f32.gmra.mxu0 %v85
    %v113 = vpop.f32.mrf.mxu0
    %v114 = vadd.f32 0.0, %v113
    %115 = vmatmul.f32.gmra.mxu0 %v88
    %v116 = vpop.f32.mrf.mxu0
    %v117 = vadd.f32 0.0, %v116
    %118 = vmatmul.f32.gmra.mxu0 %v91
    %v119 = vpop.f32.mrf.mxu0
    %v120 = vadd.f32 0.0, %v119
    %121 = vdwg.mxu0
    %v123 = vsel %vm67, %v111, 0
    %v126 = vsel %vm67, %v114, 0
    %v129 = vsel %vm67, %v117, 0
    %v132 = vsel %vm67, %v120, 0
    %134 = vmatpush.xpose.msra.mxu0 0.0
    %135 = vmatpush.xpose.msra.mxu0 0.0
    %136 = vmatpush.xpose.msra.mxu0 0.0
    %137 = vmatpush.xpose.msra.mxu0 0.0
    %138 = vmatpush.xpose.msra.mxu0 0.0
    %139 = vmatpush.xpose.msra.mxu0 0.0
    %140 = vmatpush.xpose.msra.mxu0 0.0
    %141 = vmatpush.xpose.msra.mxu0 0.0
    %142 = vmatpush.xpose.msra.mxu0 0.0
    %143 = vmatpush.xpose.msra.mxu0 0.0
    %144 = vmatpush.xpose.msra.mxu0 0.0
    %145 = vmatpush.xpose.msra.mxu0 0.0
    %146 = vmatpush.xpose.msra.mxu0 %v132
    %147 = vmatpush.xpose.msra.mxu0 %v129
    %148 = vmatpush.xpose.msra.mxu0 %v126
    %149 = vmatpush.xpose.msra.mxu0 %v123
    %150 = vmatmul.f32.gmra.mxu0 %v123
    %v151 = vpop.f32.mrf.mxu0
    %v152 = vadd.f32 0.0, %v151
    %153 = vmatmul.f32.gmra.mxu0 %v126
    %v154 = vpop.f32.mrf.mxu0
    %v155 = vadd.f32 0.0, %v154
    %156 = vmatmul.f32.gmra.mxu0 %v129
    %v157 = vpop.f32.mrf.mxu0
    %v158 = vadd.f32 0.0, %v157
    %159 = vmatmul.f32.gmra.mxu0 %v132
    %v160 = vpop.f32.mrf.mxu0
    %v161 = vadd.f32 0.0, %v160
    %162 = vdwg.mxu0
    %163 = vxpose.xlu0.b32.start [1/16] %v68, 128
    %164 = vxpose.xlu0.b32.cont [2/16] %v69, 128
    %165 = vxpose.xlu0.b32.cont [3/16] %v78, 128
    %166 = vxpose.xlu0.b32.cont [4/16] %v79, 128
    %167 = vxpose.xlu0.b32.cont [5/16] 0.0, 128
    %168 = vxpose.xlu0.b32.cont [6/16] 0.0, 128
    %169 = vxpose.xlu0.b32.cont [7/16] 0.0, 128
    %170 = vxpose.xlu0.b32.cont [8/16] 0.0, 128
    %171 = vxpose.xlu0.b32.cont [9/16] 0.0, 128
    %172 = vxpose.xlu0.b32.cont [10/16] 0.0, 128
    %173 = vxpose.xlu0.b32.cont [11/16] 0.0, 128
    %174 = vxpose.xlu0.b32.cont [12/16] 0.0, 128
    %175 = vxpose.xlu0.b32.cont [13/16] 0.0, 128
    %176 = vxpose.xlu0.b32.cont [14/16] 0.0, 128
    %177 = vxpose.xlu0.b32.cont [15/16] 0.0, 128
    %178 = vxpose.xlu0.b32.end [16/16] 0.0, 128
    %v179 = vpop.trf.xlu0
    %v180 = vpop.trf.xlu0
    %v181 = vpop.trf.xlu0
    %v182 = vpop.trf.xlu0
    %v183 = vpop.trf.xlu0
    %v184 = vpop.trf.xlu0
    %v185 = vpop.trf.xlu0
    %v186 = vpop.trf.xlu0
    %v187 = vpop.trf.xlu0
    %v188 = vpop.trf.xlu0
    %v189 = vpop.trf.xlu0
    %v190 = vpop.trf.xlu0
    %v191 = vpop.trf.xlu0
    %v192 = vpop.trf.xlu0
    %v193 = vpop.trf.xlu0
    %v194 = vpop.trf.xlu0
    %v196 = vsel %vm80, %v179, 0
    %v199 = vsel %vm80, %v180, 0
    %201 = vmatpush.msra.mxu0 0.0
    %202 = vmatpush.msra.mxu0 0.0
    %203 = vmatpush.msra.mxu0 0.0
    %204 = vmatpush.msra.mxu0 0.0
    %205 = vmatpush.msra.mxu0 0.0
    %206 = vmatpush.msra.mxu0 0.0
    %207 = vmatpush.msra.mxu0 0.0
    %208 = vmatpush.msra.mxu0 0.0
    %209 = vmatpush.msra.mxu0 0.0
    %210 = vmatpush.msra.mxu0 0.0
    %211 = vmatpush.msra.mxu0 0.0
    %212 = vmatpush.msra.mxu0 0.0
    %213 = vmatpush.msra.mxu0 %v120
    %214 = vmatpush.msra.mxu0 %v117
    %215 = vmatpush.msra.mxu0 %v114
    %216 = vmatpush.msra.mxu0 %v111
    %217 = vmatmul.f32.gmra.mxu0 %v196
    %v218 = vpop.f32.mrf.mxu0
    %v219 = vadd.f32 0.0, %v218
    %220 = vmatmul.f32.gmra.mxu0 %v199
    %v221 = vpop.f32.mrf.mxu0
    %v222 = vadd.f32 0.0, %v221
    %223 = vdwg.mxu0
    %v224 = vlaneseq
    %v225 = vshrl.u32 %v224, 7
    %v226 = vadd.s32 %v225, 8
    %v227 = vadd.s32 %v225, 16
    %v228 = vadd.s32 %v225, 24
    %v229 = vlaneseq
    %v230 = vand.u32 %v229, 127
    %vm231 = vcmp.lt.s32.totalorder %v225, 16
    %vm232 = vcmp.lt.s32.totalorder %v226, 16
    %vm233 = vcmp.lt.s32.totalorder %v227, 16
    %vm234 = vcmp.lt.s32.totalorder %v228, 16
    %vm235 = vcmp.lt.s32.totalorder %v230, 16
    %vm236 = vmand %vm231, %vm235
    %vm237 = vmand %vm232, %vm235
    %vm238 = vmand %vm233, %vm235
    %vm239 = vmand %vm234, %vm235
    %vm240 = vcmp.ge.s32.totalorder %v225, 16
    %vm241 = vcmp.ge.s32.totalorder %v226, 16
    %vm242 = vcmp.ge.s32.totalorder %v227, 16
    %vm243 = vcmp.ge.s32.totalorder %v228, 16
    %vm244 = vcmp.ge.s32.totalorder %v230, 16
    %vm245 = vmand %vm240, %vm244
    %vm246 = vmand %vm241, %vm244
    %vm247 = vmand %vm242, %vm244
    %vm248 = vmand %vm243, %vm244
    %vm249 = vcmp.eq.s32.totalorder %v225, %v230
    %vm250 = vcmp.eq.s32.totalorder %v226, %v230
    %vm251 = vcmp.eq.s32.totalorder %v227, %v230
    %vm252 = vcmp.eq.s32.totalorder %v228, %v230
    %v253 = vsel %vm249, 1, 0
    %v254 = vsel %vm250, 1, 0
    %v255 = vsel %vm251, 1, 0
    %v256 = vsel %vm252, 1, 0
    %v257 = vcvt.s32.f32 %v253
    %v258 = vcvt.s32.f32 %v254
    %v259 = vcvt.s32.f32 %v255
    %v260 = vcvt.s32.f32 %v256
    %v261 = vmul.f32 %v152, %v257
    %v262 = vmul.f32 %v155, %v258
    %v263 = vmul.f32 %v158, %v259
    %v264 = vmul.f32 %v161, %v260
    %v265 = vsel %vm80, %v261, 0.0
    %v266 = vsel %vm80, %v262, 0.0
    %v267 = vadd.f32 %v265, %v266
    %v268 = vsel %vm80, %v263, 0.0
    %v269 = vadd.f32 %v267, %v268
    %v270 = vsel %vm80, %v264, 0.0
    %v271 = vadd.f32 %v269, %v270
    %v272 = vrot.slane %v271, 4
    %v273 = vadd.f32 %v271, %v272
    %v274 = vrot.slane %v273, 2
    %v275 = vadd.f32 %v273, %v274
    %v276 = vrot.slane %v275, 1
    %v277 = vadd.f32 %v275, %v276
    %278 = vadd.xlane.f32.xlu0 %v265
    %v279 = vpop.xlane.xlu0 %278
    %280 = vadd.xlane.f32.xlu0 %v266
    %v281 = vpop.xlane.xlu0 %280
    %282 = vadd.xlane.f32.xlu0 %v268
    %v283 = vpop.xlane.xlu0 %282
    %284 = vadd.xlane.f32.xlu0 %v270
    %v285 = vpop.xlane.xlu0 %284
    %v286 = vadd.f32 %v279, %v277
    %v287 = vadd.f32 %v281, %v277
    %v288 = vadd.f32 %v283, %v277
    %v289 = vadd.f32 %v285, %v277
    %v290 = vmul.f32 %v152, 2.0
    %v291 = vmul.f32 %v155, 2.0
    %v292 = vmul.f32 %v158, 2.0
    %v293 = vmul.f32 %v161, 2.0
    %v294 = vsub.f32 %v286, %v290
    %v295 = vsub.f32 %v287, %v291
    %v296 = vsub.f32 %v288, %v292
    %v297 = vsub.f32 %v289, %v293
    %v298 = vmax.f32 %v294, 0.0
    %v299 = vmax.f32 %v295, 0.0
    %v300 = vmax.f32 %v296, 0.0
    %v301 = vmax.f32 %v297, 0.0
    %v302 = vmul.f32 %v298, -0.5
    %v303 = vmul.f32 %v299, -0.5
    %v304 = vmul.f32 %v300, -0.5
    %v305 = vmul.f32 %v301, -0.5
    %s306 = sld [smem:[#allocation2]]
    %v307 = vstv %s306
    %v308 = vrcp.pop %v307
    %v309 = vmul.f32 %v307, %v308
    %v310 = vsub.f32 1.0, %v309
    %v311 = vmul.f32 %v308, %v310
    %v312 = vadd.f32 %v308, %v311
    %vm313 = vweird.f32 %v307
    %vm314 = vweird.f32 %v308
    %vm315 = vmor %vm313, %vm314
    %v316 = vsel %vm315, %v308, %v312
    %v317 = vand.u32 2147483647, %v307
    %vm318 = vcmp.eq.f32.partialorder %v317, 8.507059e+37
    %v319 = vand.u32 %v307, 2147483648
    %v320 = vor.u32 1.1754944e-38, %v319
    %v321 = vsel %vm318, %v320, %v316
    %v322 = vmul.f32 %v302, %v321
    %v323 = vmul.f32 %v303, %v321
    %v324 = vmul.f32 %v304, %v321
    %v325 = vmul.f32 %v305, %v321
    %v326 = vmul.f32 %v322, 1.442695
    %v327 = vpow.pop %v326
    %v328 = vmul.f32 %v323, 1.442695
    %v329 = vpow.pop %v328
    %v330 = vmul.f32 %v324, 1.442695
    %v331 = vpow.pop %v330
    %v332 = vmul.f32 %v325, 1.442695
    %v333 = vpow.pop %v332
    %v334 = vsel %vm245, 0.00390625, -0.00390625
    %v335 = vsel %vm246, 0.00390625, -0.00390625
    %v336 = vsel %vm247, 0.00390625, -0.00390625
    %v337 = vsel %vm248, 0.00390625, -0.00390625
    %v338 = vsel %vm236, 0.00390625, %v334
    %v339 = vsel %vm237, 0.00390625, %v335
    %v340 = vsel %vm238, 0.00390625, %v336
    %v341 = vsel %vm239, 0.00390625, %v337
    %v342 = vmul.f32 %v338, %v327
    %v343 = vmul.f32 %v339, %v329
    %v344 = vmul.f32 %v340, %v331
    %v345 = vmul.f32 %v341, %v333
    %v346 = vsel %vm80, %v342, 0.0
    %347 = vadd.xlane.f32.xlu0 %v346
    %v348 = vpop.xlane.xlu0 %347
    %v349 = vsel %vm80, %v343, 0.0
    %350 = vadd.xlane.f32.xlu0 %v349
    %v351 = vpop.xlane.xlu0 %350
    %v352 = vsel %vm80, %v344, 0.0
    %353 = vadd.xlane.f32.xlu0 %v352
    %v354 = vpop.xlane.xlu0 %353
    %v355 = vsel %vm80, %v345, 0.0
    %356 = vadd.xlane.f32.xlu0 %v355
    %v357 = vpop.xlane.xlu0 %356
    %v358 = vadd.f32 %v348, %v351
    %v359 = vadd.f32 %v358, %v354
    %v360 = vadd.f32 %v359, %v357
    %v361 = vrot.slane %v360, 4
    %v362 = vadd.f32 %v360, %v361
    %v363 = vrot.slane %v362, 2
    %v364 = vadd.f32 %v362, %v363
    %v365 = vrot.slane %v364, 1
    %v366 = vadd.f32 %v364, %v365
    %v367 = vmax.f32 %v366, 0.0
    %vm368 = vcmask 0
    %369 = vst.msk [vmem:[#allocation6] sm:$0x1] %vm368, %v367
    %s370 = sld [smem:[#allocation3]]
    %s371 = sld [smem:[#allocation3 + $0x1]]
    %v372 = vsub.f32 %v219, %v53
    %v373 = vsub.f32 %v222, %v53
    %v374 = vmul.f32 %v372, %v372
    %v375 = vsel %vm67, %v374, 0.0
    %376 = vadd.xlane.f32.xlu0 %v375
    %v377 = vpop.xlane.xlu0 %376
    %v378 = vrot.slane %v377, 4
    %v379 = vadd.f32 %v377, %v378
    %v380 = vrot.slane %v379, 2
    %v381 = vadd.f32 %v379, %v380
    %v382 = vrot.slane %v381, 1
    %v383 = vadd.f32 %v381, %v382
    %v384 = vrsqrt.pop %v383
    %v385 = vmul.f32 %v384, %v383
    %v386 = vmul.f32 %v385, %v384
    %v387 = vmul.f32 0.5, %v386
    %v388 = vsub.f32 1.5, %v387
    %v389 = vmul.f32 %v384, %v388
    %v390 = vmul.f32 %v383, %v389
    %vm391 = vcmp.eq.f32.partialorder %v383, inf
    %v392 = vsel %vm391, %v383, %v390
    %vm393 = vcmp.eq.f32.partialorder %v383, 0.0
    %v394 = vand.u32 %v383, 2147483648
    %v395 = vsel %vm393, %v394, %v392
    %v396 = vmul.f32 %v373, %v373
    %v397 = vsel %vm67, %v396, 0.0
    %398 = vadd.xlane.f32.xlu0 %v397
    %v399 = vpop.xlane.xlu0 %398
    %v400 = vrot.slane %v399, 4
    %v401 = vadd.f32 %v399, %v400
    %v402 = vrot.slane %v401, 2
    %v403 = vadd.f32 %v401, %v402
    %v404 = vrot.slane %v403, 1
    %v405 = vadd.f32 %v403, %v404
    %v406 = vrsqrt.pop %v405
    %v407 = vmul.f32 %v406, %v405
    %v408 = vmul.f32 %v407, %v406
    %v409 = vmul.f32 0.5, %v408
    %v410 = vsub.f32 1.5, %v409
    %v411 = vmul.f32 %v406, %v410
    %v412 = vmul.f32 %v405, %v411
    %vm413 = vcmp.eq.f32.partialorder %v405, inf
    %v414 = vsel %vm413, %v405, %v412
    %vm415 = vcmp.eq.f32.partialorder %v405, 0.0
    %v416 = vand.u32 %v405, 2147483648
    %v417 = vsel %vm415, %v416, %v414
    %v418 = vadd.f32 %v395, %v417
    %v419 = vstv %s370
    %v420 = vmul.f32 %v418, %v419
    %421 = vst.msk [vmem:[#allocation7] sm:$0x1] %vm368, %v420
    %v422 = vsub.f32 %v152, %v55
    %v423 = vsub.f32 %v155, %v56
    %v424 = vsub.f32 %v158, %v65
    %v425 = vsub.f32 %v161, %v66
    %v426 = vmul.f32 %v422, %v422
    %v427 = vmul.f32 %v423, %v423
    %v428 = vmul.f32 %v424, %v424
    %v429 = vmul.f32 %v425, %v425
    %v430 = vsel %vm236, %v426, 0.0
    %v431 = vsel %vm237, %v427, 0.0
    %v432 = vsel %vm238, %v428, 0.0
    %v433 = vsel %vm239, %v429, 0.0
    %v434 = vsel %vm80, %v430, 0.0
    %435 = vadd.xlane.f32.xlu0 %v434
    %v436 = vpop.xlane.xlu0 %435
    %v437 = vsel %vm80, %v431, 0.0
    %438 = vadd.xlane.f32.xlu0 %v437
    %v439 = vpop.xlane.xlu0 %438
    %v440 = vsel %vm80, %v432, 0.0
    %441 = vadd.xlane.f32.xlu0 %v440
    %v442 = vpop.xlane.xlu0 %441
    %v443 = vsel %vm80, %v433, 0.0
    %444 = vadd.xlane.f32.xlu0 %v443
    %v445 = vpop.xlane.xlu0 %444
    %v446 = vadd.f32 %v436, %v439
    %v447 = vadd.f32 %v446, %v442
    %v448 = vadd.f32 %v447, %v445
    %v449 = vrot.slane %v448, 4
    %v450 = vadd.f32 %v448, %v449
    %v451 = vrot.slane %v450, 2
    %v452 = vadd.f32 %v450, %v451
    %v453 = vrot.slane %v452, 1
    %v454 = vadd.f32 %v452, %v453
    %v455 = vsel %vm245, %v426, 0.0
    %v456 = vsel %vm246, %v427, 0.0
    %v457 = vsel %vm247, %v428, 0.0
    %v458 = vsel %vm248, %v429, 0.0
    %v459 = vsel %vm80, %v455, 0.0
    %460 = vadd.xlane.f32.xlu0 %v459
    %v461 = vpop.xlane.xlu0 %460
    %v462 = vsel %vm80, %v456, 0.0
    %463 = vadd.xlane.f32.xlu0 %v462
    %v464 = vpop.xlane.xlu0 %463
    %v465 = vsel %vm80, %v457, 0.0
    %466 = vadd.xlane.f32.xlu0 %v465
    %v467 = vpop.xlane.xlu0 %466
    %v468 = vsel %vm80, %v458, 0.0
    %469 = vadd.xlane.f32.xlu0 %v468
    %v470 = vpop.xlane.xlu0 %469
    %v471 = vadd.f32 %v461, %v464
    %v472 = vadd.f32 %v471, %v467
    %v473 = vadd.f32 %v472, %v470
    %v474 = vrot.slane %v473, 4
    %v475 = vadd.f32 %v473, %v474
    %v476 = vrot.slane %v475, 2
    %v477 = vadd.f32 %v475, %v476
    %v478 = vrot.slane %v477, 1
    %v479 = vadd.f32 %v477, %v478
    %v480 = vrsqrt.pop %v454
    %v481 = vmul.f32 %v480, %v454
    %v482 = vmul.f32 %v481, %v480
    %v483 = vmul.f32 0.5, %v482
    %v484 = vsub.f32 1.5, %v483
    %v485 = vmul.f32 %v480, %v484
    %v486 = vmul.f32 %v454, %v485
    %vm487 = vcmp.eq.f32.partialorder %v454, inf
    %v488 = vsel %vm487, %v454, %v486
    %vm489 = vcmp.eq.f32.partialorder %v454, 0.0
    %v490 = vand.u32 %v454, 2147483648
    %v491 = vsel %vm489, %v490, %v488
    %v492 = vrsqrt.pop %v479
    %v493 = vmul.f32 %v492, %v479
    %v494 = vmul.f32 %v493, %v492
    %v495 = vmul.f32 0.5, %v494
    %v496 = vsub.f32 1.5, %v495
    %v497 = vmul.f32 %v492, %v496
    %v498 = vmul.f32 %v479, %v497
    %vm499 = vcmp.eq.f32.partialorder %v479, inf
    %v500 = vsel %vm499, %v479, %v498
    %vm501 = vcmp.eq.f32.partialorder %v479, 0.0
    %v502 = vand.u32 %v479, 2147483648
    %v503 = vsel %vm501, %v502, %v500
    %v504 = vadd.f32 %v491, %v503
    %v505 = vstv %s371
    %v506 = vmul.f32 %v504, %v505
    %507 = vst.msk [vmem:[#allocation9] sm:$0x1] %vm368, %v506
    // Predicated region
    $region34: #{_fused_forward.1} parent=1 // pred_check
      _
    $region35: #{_fused_forward.1} parent=1 // pred_check_branch
      %509 = sbr.rel (0) target = $region37
    $region36: #{_fused_forward.1} parent=1 // pred_region
      %511 = vsyncadd [#allocation4], 0
      %s513 = sshll.u32 [#allocation6], 4
      %s514 = int_to_ptr.vmem [resolvable:$true] %s513
      %s515 = sshll.u32 %s7, 4
      %s516 = int_to_ptr.hbm [resolvable:$true] %s515
      %518 = dma.vmem_to_hbm [thread:$0]  %s514, 16, %s516, [#allocation4]
    $region37: #{_fused_forward.1} parent=1 // pred_fallthru
      _
    // Predicated region
    $region38: #{_fused_forward.1} parent=1 // pred_check
      _
    $region39: #{_fused_forward.1} parent=1 // pred_check_branch
      %520 = sbr.rel (0) target = $region41
    $region40: #{_fused_forward.1} parent=1 // pred_region
      %522 = vsyncadd [#allocation8], 0
      %s524 = sshll.u32 [#allocation7], 4
      %s525 = int_to_ptr.vmem [resolvable:$true] %s524
      %s526 = sshll.u32 %s8, 4
      %s527 = int_to_ptr.hbm [resolvable:$true] %s526
      %529 = dma.vmem_to_hbm [thread:$0]  %s525, 16, %s527, [#allocation8]
    $region41: #{_fused_forward.1} parent=1 // pred_fallthru
      _
    // Predicated region
    $region42: #{_fused_forward.1} parent=1 // pred_check
      _
    $region43: #{_fused_forward.1} parent=1 // pred_check_branch
      %531 = sbr.rel (0) target = $region45
    $region44: #{_fused_forward.1} parent=1 // pred_region
      %533 = vsyncadd [#allocation8], 0
      %s535 = sshll.u32 [#allocation9], 4
      %s536 = int_to_ptr.vmem [resolvable:$true] %s535
      %s537 = sshll.u32 %s9, 4
      %s538 = int_to_ptr.hbm [resolvable:$true] %s537
      %540 = dma.vmem_to_hbm [thread:$0]  %s536, 16, %s538, [#allocation8]
    $region45: #{_fused_forward.1} parent=1 // pred_fallthru
      _
    // Predicated region
    $region46: #{_fused_forward.1} parent=1 // pred_check
      _
    $region47: #{_fused_forward.1} parent=1 // pred_check_branch
      %542 = sbr.rel (0) target = $region49
    $region48: #{_fused_forward.1} parent=1 // pred_region
      %544 = dma.done [#allocation4], 16
    $region49: #{_fused_forward.1} parent=1 // pred_fallthru
      _
    // Predicated region
    $region50: #{_fused_forward.1} parent=1 // pred_check
      _
    $region51: #{_fused_forward.1} parent=1 // pred_check_branch
      %546 = sbr.rel (0) target = $region53
    $region52: #{_fused_forward.1} parent=1 // pred_region
      %548 = dma.done [#allocation8], 16
    $region53: #{_fused_forward.1} parent=1 // pred_fallthru
      _
    // Predicated region
    $region54: #{_fused_forward.1} parent=1 // pred_check
      _
    $region55: #{_fused_forward.1} parent=1 // pred_check_branch
      %550 = sbr.rel (0) target = $region57
    $region56: #{_fused_forward.1} parent=1 // pred_region
      %552 = dma.done [#allocation8], 16
    $region57: #{_fused_forward.1} parent=1 // pred_fallthru
      _
    %553 = vsyncpa [#allocation4], 1
    %554 = vsyncpa [#allocation8], 1
    %555 = vsyncpa [#allocation5], 1

</llo_original>
